<compile_context>
chip_gen: v6e
topology: v6e:2x2x1
jax: 0.10.0
libtpu: 0.0.40
codegen_flags: <defaults>
</compile_context>

<pallas_src>
import functools

import jax
import jax.numpy as jnp
from jax import lax
from jax.experimental import pallas as pl
from jax.experimental.pallas import tpu as pltpu

LANE = 128      # TPU lane width (last-dim vector width)
SUBLANE = 8     # TPU sublane width (second-to-last dim)


def _round_up(x, m):
    return (x + m - 1) // m * m


def _fused_mlp_kernel(x_ref, w1_ref, w_ref, b_ref, o_ref, *, num_layers):
    # x_ref : (tb, Kin)            input tile (f32 in HBM, cast to bf16 here)
    # w1_ref: (Kin, P)  bf16       first-layer weight
    # w_ref : (L-1, P, P) bf16     stacked hidden + final weights
    # b_ref : (L, 1, P) f32        stacked biases
    # o_ref : (tb, P)              lane-dense output tile
    h = jnp.dot(x_ref[...].astype(jnp.bfloat16), w1_ref[...],
                preferred_element_type=jnp.float32) + b_ref[0]

    if num_layers <= 8:
        # Shallow: unroll -> full LLO scheduler visibility.
        for l in range(1, num_layers):
            # tanh kept in f32 (v5e has no bf16 EUP; revisit on v6e/v7x only
            # if the EUP becomes the saturating slot).
            h = jnp.dot(jnp.tanh(h).astype(jnp.bfloat16), w_ref[l - 1],
                        preferred_element_type=jnp.float32) + b_ref[l]
    else:
        # Deep: compact loop over the stacked VMEM-resident weights.
        def body(l, hh):
            return jnp.dot(jnp.tanh(hh).astype(jnp.bfloat16), w_ref[l - 1],
                           preferred_element_type=jnp.float32) + b_ref[l]
        h = lax.fori_loop(1, num_layers, body, h, unroll=2)

    o_ref[...] = h.astype(o_ref.dtype)   # full 128-lane (unmasked) store


def pack_dnn2_params(params, weight_dtype=jnp.bfloat16):
    """Pack DNN2 params for the fused kernel.

    Returns (w1: (Kin, P) bf16, w_stack: (L-1, P, P) bf16, b_stack: (L,1,P) f32)
    where Kin = round_up(input_size, 8) and P = round_up(max width, 128)
    (widths > 128 are rounded to 256 multiples to fill the v6e/v7x MXU).
    Zero padding is exact through the whole network because tanh(0) = 0.
    """
    f_in, first_out = params[0][0].shape
    widths = [w.shape[1] for (w, _) in params] + \
             [w.shape[0] for (w, _) in params[1:]]
    pad = _round_up(max(widths), LANE)
    if pad > LANE:                     # keep the 256x256 MXU full on v6e/v7x
        pad = _round_up(pad, 2 * LANE)
    kin = _round_up(f_in, SUBLANE)

    w1, b1 = params[0]
    w1p = (jnp.zeros((kin, pad), weight_dtype)
           .at[:f_in, :first_out].set(w1.astype(weight_dtype)))

    ws = []
    bs = [jnp.zeros((1, pad), jnp.float32)
          .at[0, :b1.shape[0]].set(b1.astype(jnp.float32))]
    for (w, b) in params[1:]:
        fi, fo = w.shape
        ws.append(jnp.zeros((pad, pad), weight_dtype)
                  .at[:fi, :fo].set(w.astype(weight_dtype)))
        bs.append(jnp.zeros((1, pad), jnp.float32)
                  .at[0, :fo].set(b.astype(jnp.float32)))
    return w1p, jnp.stack(ws), jnp.stack(bs)


def _pick_batch_tile(batch, block_batch):
    """Batch tile honoring the sublane rule and v7x two-TensorCore sharding."""
    tb = min(_round_up(block_batch, SUBLANE), _round_up(batch, SUBLANE))
    # v7x has 2 TCs; give the "parallel" batch axis >= 2 grid steps whenever
    # the batch can be split (harmless on single-TC v5e/v6e).
    if batch > SUBLANE and pl.cdiv(batch, tb) < 2:
        tb = _round_up(pl.cdiv(batch, 2), SUBLANE)
    if tb >= batch:
        tb = batch        # full-dim block: legal even if batch % 8 != 0
    return tb


@functools.partial(jax.jit,
                   static_argnames=("output_size", "block_batch", "out_dtype"))
def dnn2_forward(x, w1, w_stack, b_stack, *, output_size,
                 block_batch=2048, out_dtype=None):
    """Fused forward pass: (Linear -> Tanh) * (L-1), then final Linear."""
    batch, f_in = x.shape
    kin, pad = w1.shape
    num_layers = b_stack.shape[0]
    out_dtype = x.dtype if out_dtype is None else out_dtype

    # Tiny wrapper-side pad of the feature dim only (e.g. 4 -> 8), with
    # explicit zeros so the extra lanes are exactly 0.
    x_in = x if f_in == kin else jnp.pad(x, ((0, 0), (0, kin - f_in)))

    tb = _pick_batch_tile(batch, block_batch)
    grid = (pl.cdiv(batch, tb),)       # partial last block; no junk rows

    # Advisory only; counts the padded (P-wide) work.
    cost = pl.CostEstimate(
        flops=2 * batch * (kin * pad + (num_layers - 1) * pad * pad),
        transcendentals=batch * pad * (num_layers - 1),
        bytes_accessed=int(x_in.size * x_in.dtype.itemsize
                           + w1.size * w1.dtype.itemsize
                           + w_stack.size * w_stack.dtype.itemsize
                           + b_stack.size * b_stack.dtype.itemsize
                           + batch * pad * jnp.dtype(out_dtype).itemsize),
    )

    kernel = functools.partial(_fused_mlp_kernel, num_layers=num_layers)
    out = pl.pallas_call(
        kernel,
        out_shape=jax.ShapeDtypeStruct((batch, pad), out_dtype),
        grid=grid,
        in_specs=[
            # Activations: tiled over batch, software-pipelined.
            pl.BlockSpec((tb, kin), lambda i: (i, 0)),
            # Weights / biases: constant block index -> fetched once,
            # VMEM-resident for every batch tile.
            pl.BlockSpec((kin, pad), lambda i: (0, 0)),
            pl.BlockSpec((num_layers - 1, pad, pad), lambda i: (0, 0, 0)),
            pl.BlockSpec((num_layers, 1, pad), lambda i: (0, 0, 0)),
        ],
        out_specs=pl.BlockSpec((tb, pad), lambda i: (i, 0)),
        compiler_params=pltpu.CompilerParams(
            dimension_semantics=("parallel",)),
        cost_estimate=cost,
    )(x_in, w1, w_stack, b_stack)

    return out[:, :output_size]


def init_dnn2_params(key, input_size, hidden_size, output_size, hidden_num,
                     dtype=jnp.float32):
    """Deterministic init matching DNN2's layer shapes.

    PyTorch nn.Linear stores W as (out, in); we store the transpose (in, out)
    so the kernel computes x @ W directly.
    """
    sizes = [(input_size, hidden_size)]
    for _ in range(2, hidden_num + 1):
        sizes.append((hidden_size, hidden_size))
    sizes.append((hidden_size, output_size))

    params = []
    for (fan_in, fan_out) in sizes:
        key, kw, kb = jax.random.split(key, 3)
        bound = 1.0 / jnp.sqrt(jnp.asarray(fan_in, dtype))
        w = jax.random.uniform(kw, (fan_in, fan_out), dtype, -bound, bound)
        bvec = jax.random.uniform(kb, (fan_out,), dtype, -bound, bound)
        params.append((w, bvec))
    return params


if __name__ == "__main__":
    # Small shapes consistent with the module's forward.
    batch = 8
    input_size = 4
    hidden_size = 32
    output_size = 2
    hidden_num = 3

    key = jax.random.PRNGKey(0)
    key, kx = jax.random.split(key)
    x = jax.random.normal(kx, (batch, input_size), jnp.float32)

    params = init_dnn2_params(key, input_size, hidden_size, output_size,
                              hidden_num)
    w1, w_stack, b_stack = pack_dnn2_params(params)

    out = dnn2_forward(x, w1, w_stack, b_stack, output_size=output_size)
    jax.block_until_ready(out)
    assert out.shape == (batch, output_size)

    # Reference 1: identical math in plain JAX (bf16 operands, f32 accum).
    ref = x
    for (w, b) in params[:-1]:
        ref = jnp.tanh(jnp.dot(ref.astype(jnp.bfloat16), w.astype(jnp.bfloat16),
                               preferred_element_type=jnp.float32) + b)
    wl, bl = params[-1]
    ref = jnp.dot(ref.astype(jnp.bfloat16), wl.astype(jnp.bfloat16),
                  preferred_element_type=jnp.float32) + bl
    assert jnp.allclose(out, ref, atol=2e-2, rtol=2e-2), \
        float(jnp.abs(out - ref).max())

    # Reference 2: full-f32 path; bf16 weights/activations introduce ~1e-2
    # level error, so the tolerance is correspondingly loose.
    ref32 = x
    for (w, b) in params[:-1]:
        ref32 = jnp.tanh(jnp.dot(ref32, w,
                                 preferred_element_type=jnp.float32) + b)
    ref32 = (jnp.dot(ref32, params[-1][0],
                     preferred_element_type=jnp.float32) + params[-1][1])
    assert jnp.allclose(out, ref32, atol=7e-2, rtol=7e-2), \
        float(jnp.abs(out - ref32).max())

    print("KERNEL_OK")
</pallas_src>

<mosaic_0001>
module attributes {stable_mosaic.version = 11 : i64} {
  func.func @_fused_mlp_kernel(%arg0: i32, %arg1: memref<8x8xf32, #tpu.memory_space<vmem>>, %arg2: memref<8x128xbf16, #tpu.memory_space<vmem>>, %arg3: memref<3x128x128xbf16, #tpu.memory_space<vmem>>, %arg4: memref<4x1x128xf32, #tpu.memory_space<vmem>>, %arg5: memref<8x128xf32, #tpu.memory_space<vmem>>) attributes {dimension_semantics = [#tpu.dimension_semantics<parallel>], iteration_bounds = array<i64: 1>, scalar_prefetch = 0 : i64, scratch_operands = 0 : i64, tpu.core_type = #tpu.core_type<tc>, window_params = [{transform_indices = @transform_0, window_bounds = array<i64: 8, 8>}, {pipeline_mode = #tpu.pipeline_mode<synchronous>, transform_indices = @transform_1, window_bounds = array<i64: 8, 128>}, {pipeline_mode = #tpu.pipeline_mode<synchronous>, transform_indices = @transform_2, window_bounds = array<i64: 3, 128, 128>}, {pipeline_mode = #tpu.pipeline_mode<synchronous>, transform_indices = @transform_3, window_bounds = array<i64: 4, 1, 128>}, {transform_indices = @transform_4, window_bounds = array<i64: 8, 128>}]} {
    %c0 = arith.constant 0 : index
    %c0_0 = arith.constant 0 : index
    %0 = vector.load %arg1[%c0, %c0_0] : memref<8x8xf32, #tpu.memory_space<vmem>>, vector<8x8xf32>
    %1 = arith.truncf %0 : vector<8x8xf32> to vector<8x8xbf16>
    %c0_1 = arith.constant 0 : index
    %c0_2 = arith.constant 0 : index
    %2 = vector.load %arg2[%c0_1, %c0_2] : memref<8x128xbf16, #tpu.memory_space<vmem>>, vector<8x128xbf16>
    %cst = arith.constant dense<0.000000e+00> : vector<8x128xf32>
    %3 = tpu.matmul %1, %2, %cst {dimension_numbers = #tpu.dot_dimension_numbers<[1], [0], [0], [1], [0, 0, 1, 1], [], []>} : vector<8x8xbf16>, vector<8x128xbf16>, vector<8x128xf32> -> vector<8x128xf32>
    %c0_3 = arith.constant 0 : index
    %c0_4 = arith.constant 0 : index
    %c0_5 = arith.constant 0 : index
    %4 = vector.load %arg4[%c0_3, %c0_4, %c0_5] : memref<4x1x128xf32, #tpu.memory_space<vmem>>, vector<1x1x128xf32>
    %5 = vector.shape_cast %4 : vector<1x1x128xf32> to vector<1x128xf32>
    %6 = vector.broadcast %5 : vector<1x128xf32> to vector<8x128xf32>
    %7 = arith.addf %3, %6 : vector<8x128xf32>
    %8 = math.tanh %7 : vector<8x128xf32>
    %9 = arith.truncf %8 : vector<8x128xf32> to vector<8x128xbf16>
    %c0_6 = arith.constant 0 : index
    %c0_7 = arith.constant 0 : index
    %c0_8 = arith.constant 0 : index
    %10 = vector.load %arg3[%c0_6, %c0_7, %c0_8] : memref<3x128x128xbf16, #tpu.memory_space<vmem>>, vector<1x128x128xbf16>
    %11 = vector.shape_cast %10 : vector<1x128x128xbf16> to vector<128x128xbf16>
    %cst_9 = arith.constant dense<0.000000e+00> : vector<8x128xf32>
    %12 = tpu.matmul %9, %11, %cst_9 {dimension_numbers = #tpu.dot_dimension_numbers<[1], [0], [0], [1], [0, 0, 1, 1], [], []>} : vector<8x128xbf16>, vector<128x128xbf16>, vector<8x128xf32> -> vector<8x128xf32>
    %c1 = arith.constant 1 : index
    %c0_10 = arith.constant 0 : index
    %c0_11 = arith.constant 0 : index
    %13 = vector.load %arg4[%c1, %c0_10, %c0_11] : memref<4x1x128xf32, #tpu.memory_space<vmem>>, vector<1x1x128xf32>
    %14 = vector.shape_cast %13 : vector<1x1x128xf32> to vector<1x128xf32>
    %15 = vector.broadcast %14 : vector<1x128xf32> to vector<8x128xf32>
    %16 = arith.addf %12, %15 : vector<8x128xf32>
    %17 = math.tanh %16 : vector<8x128xf32>
    %18 = arith.truncf %17 : vector<8x128xf32> to vector<8x128xbf16>
    %c1_12 = arith.constant 1 : index
    %c0_13 = arith.constant 0 : index
    %c0_14 = arith.constant 0 : index
    %19 = vector.load %arg3[%c1_12, %c0_13, %c0_14] : memref<3x128x128xbf16, #tpu.memory_space<vmem>>, vector<1x128x128xbf16>
    %20 = vector.shape_cast %19 : vector<1x128x128xbf16> to vector<128x128xbf16>
    %cst_15 = arith.constant dense<0.000000e+00> : vector<8x128xf32>
    %21 = tpu.matmul %18, %20, %cst_15 {dimension_numbers = #tpu.dot_dimension_numbers<[1], [0], [0], [1], [0, 0, 1, 1], [], []>} : vector<8x128xbf16>, vector<128x128xbf16>, vector<8x128xf32> -> vector<8x128xf32>
    %c2 = arith.constant 2 : index
    %c0_16 = arith.constant 0 : index
    %c0_17 = arith.constant 0 : index
    %22 = vector.load %arg4[%c2, %c0_16, %c0_17] : memref<4x1x128xf32, #tpu.memory_space<vmem>>, vector<1x1x128xf32>
    %23 = vector.shape_cast %22 : vector<1x1x128xf32> to vector<1x128xf32>
    %24 = vector.broadcast %23 : vector<1x128xf32> to vector<8x128xf32>
    %25 = arith.addf %21, %24 : vector<8x128xf32>
    %26 = math.tanh %25 : vector<8x128xf32>
    %27 = arith.truncf %26 : vector<8x128xf32> to vector<8x128xbf16>
    %c2_18 = arith.constant 2 : index
    %c0_19 = arith.constant 0 : index
    %c0_20 = arith.constant 0 : index
    %28 = vector.load %arg3[%c2_18, %c0_19, %c0_20] : memref<3x128x128xbf16, #tpu.memory_space<vmem>>, vector<1x128x128xbf16>
    %29 = vector.shape_cast %28 : vector<1x128x128xbf16> to vector<128x128xbf16>
    %cst_21 = arith.constant dense<0.000000e+00> : vector<8x128xf32>
    %30 = tpu.matmul %27, %29, %cst_21 {dimension_numbers = #tpu.dot_dimension_numbers<[1], [0], [0], [1], [0, 0, 1, 1], [], []>} : vector<8x128xbf16>, vector<128x128xbf16>, vector<8x128xf32> -> vector<8x128xf32>
    %c3 = arith.constant 3 : index
    %c0_22 = arith.constant 0 : index
    %c0_23 = arith.constant 0 : index
    %31 = vector.load %arg4[%c3, %c0_22, %c0_23] : memref<4x1x128xf32, #tpu.memory_space<vmem>>, vector<1x1x128xf32>
    %32 = vector.shape_cast %31 : vector<1x1x128xf32> to vector<1x128xf32>
    %33 = vector.broadcast %32 : vector<1x128xf32> to vector<8x128xf32>
    %34 = arith.addf %30, %33 : vector<8x128xf32>
    %c0_24 = arith.constant 0 : index
    %c0_25 = arith.constant 0 : index
    %35 = vector.load %arg5[%c0_24, %c0_25] : memref<8x128xf32, #tpu.memory_space<vmem>>, vector<8x128xf32>
    tpu.vector_store %arg5[%c0_24, %c0_25], %34 {strides = array<i32>} : memref<8x128xf32, #tpu.memory_space<vmem>>, vector<8x128xf32>,
    return
  }
  func.func @transform_0(%arg0: i32) -> (i32, i32) {
    %c0_i32 = arith.constant 0 : i32
    %c0_i32_0 = arith.constant 0 : i32
    return %arg0, %c0_i32 : i32, i32
  }
  func.func @transform_1(%arg0: i32) -> (i32, i32) {
    %c0_i32 = arith.constant 0 : i32
    %c0_i32_0 = arith.constant 0 : i32
    %c0_i32_1 = arith.constant 0 : i32
    return %c0_i32, %c0_i32_0 : i32, i32
  }
  func.func @transform_2(%arg0: i32) -> (i32, i32, i32) {
    %c0_i32 = arith.constant 0 : i32
    %c0_i32_0 = arith.constant 0 : i32
    %c0_i32_1 = arith.constant 0 : i32
    %c0_i32_2 = arith.constant 0 : i32
    return %c0_i32, %c0_i32_0, %c0_i32_1 : i32, i32, i32
  }
  func.func @transform_3(%arg0: i32) -> (i32, i32, i32) {
    %c0_i32 = arith.constant 0 : i32
    %c0_i32_0 = arith.constant 0 : i32
    %c0_i32_1 = arith.constant 0 : i32
    %c0_i32_2 = arith.constant 0 : i32
    return %c0_i32, %c0_i32_0, %c0_i32_1 : i32, i32, i32
  }
  func.func @transform_4(%arg0: i32) -> (i32, i32) {
    %c0_i32 = arith.constant 0 : i32
    %c0_i32_0 = arith.constant 0 : i32
    return %arg0, %c0_i32 : i32, i32
  }
}

</mosaic_0001>

<llo_original>
// kernel: dnn2_forward.1
$region0: #{dnn2_forward.1}
  #allocation0 [shape = 'u32[]', space=smem, size = 0x4, offset = 0x4, fixed_abs, tag = 'smem constant byte address 0x4 - core index']
  #allocation1 [shape = 'u32[144,128]{1,0:T(1,128)}', space=vmem, size = 0x12000, scoped, tag = 'internal scratch']
  %s0 = inlined_call_operand.vmem [shape: f32[8,8], index: 0, kind: input, shape index: {}]
  %s1 = inlined_call_operand.vmem [shape: bf16[8,128], index: 1, kind: input, shape index: {}]
  %s2 = inlined_call_operand.hbm [shape: bf16[3,128,128], index: 2, kind: input, shape index: {}]
  %s3 = inlined_call_operand.vmem [shape: f32[4,1,128], index: 3, kind: input, shape index: {}]
  %s4 = inlined_call_operand.vmem [shape: f32[8,128], index: 4, kind: output, shape index: {}]
  %s5 = sld [smem:[#allocation0]]
  $region30: #{dnn2_forward.1} parent=0
    _
  %s7 = ssub.s32 1, %s5
  %s8 = scalar_select 0, %s7, %s5
  $region1: #{dnn2_forward.1} parent=0
    #allocation2 [shape = 'u8[98304]{0}', space=vmem, size = 0x18000, scoped, tag = 'input window, operand 2, single buffered']
    #allocation3 [shape = 's32[1]{0}', space=sflag, size = 0x4, scoped, tag = 'scoped memory for dnn2_forward.1']
    %9 = vsyncpa [#allocation3], 0
    // Predicated region
    $region2: #{dnn2_forward.1} parent=1 // pred_check
      _
    $region3: #{dnn2_forward.1} parent=1 // pred_check_branch
      %11 = sbr.rel (0) target = $region5
    $region4: #{dnn2_forward.1} parent=1 // pred_region
      _
    $region5: #{dnn2_forward.1} parent=1 // pred_fallthru
      _
    // Predicated region
    $region6: #{dnn2_forward.1} parent=1 // pred_check
      _
    $region7: #{dnn2_forward.1} parent=1 // pred_check_branch
      %13 = sbr.rel (0) target = $region9
    $region8: #{dnn2_forward.1} parent=1 // pred_region
      _
    $region9: #{dnn2_forward.1} parent=1 // pred_fallthru
      _
    // Predicated region
    $region10: #{dnn2_forward.1} parent=1 // pred_check
      _
    $region11: #{dnn2_forward.1} parent=1 // pred_check_branch
      %15 = sbr.rel (0) target = $region13
    $region12: #{dnn2_forward.1} parent=1 // pred_region
      %s17 = ssub.s32 3072, 3072
      %18 = vsyncadd [#allocation3], %s17
      %s19 = sshll.u32 [#allocation2], 4
      %s20 = int_to_ptr.vmem [resolvable:$true] %s19
      %25 = dma.hbm_to_vmem [thread:$0]  %s2, 3072, %s20, [#allocation3], 64, 64, 4
    $region13: #{dnn2_forward.1} parent=1 // pred_fallthru
      _
    // Predicated region
    $region14: #{dnn2_forward.1} parent=1 // pred_check
      _
    $region15: #{dnn2_forward.1} parent=1 // pred_check_branch
      %27 = sbr.rel (0) target = $region17
    $region16: #{dnn2_forward.1} parent=1 // pred_region
      _
    $region17: #{dnn2_forward.1} parent=1 // pred_fallthru
      _
    // Predicated region
    $region18: #{dnn2_forward.1} parent=1 // pred_check
      _
    $region19: #{dnn2_forward.1} parent=1 // pred_check_branch
      %29 = sbr.rel (0) target = $region21
    $region20: #{dnn2_forward.1} parent=1 // pred_region
      %30 = dma.done [#allocation3], 3072
    $region21: #{dnn2_forward.1} parent=1 // pred_fallthru
      _
    %v32 = vld [vmem:[%s0] sm:$0xff]
    %v33 = vpack.c.bf16 %v32, %v32
    %v34 = vld [vmem:[%s1] sm:$0xf]
    %v35 = vld [vmem:[%s3] sm:$0x1]
    %v37 = vlaneseq
    %v38 = vshrl.u32 %v37, 7
    %v39 = vsub.s32 0, %v38
    %v40 = vrot.slane %v35, %v39
    %vm42 = vcmask 64512
    %v44 = vsel %vm42, %v33, 0
    %vm46 = vcmask 1043456
    %v48 = vsel %vm46, %v34, 0
    %50 = vmatprep.subr.bf16.mxu0 0
    %51 = vmatpush1.bf16.msra.mxu0 0
    %52 = vmatprep.subr.bf16.mxu0 0
    %53 = vmatpush1.bf16.msra.mxu0 0
    %54 = vmatprep.subr.bf16.mxu0 0
    %55 = vmatpush1.bf16.msra.mxu0 0
    %56 = vmatprep.subr.bf16.mxu0 0
    %57 = vmatpush1.bf16.msra.mxu0 0
    %58 = vmatprep.subr.bf16.mxu0 0
    %59 = vmatpush1.bf16.msra.mxu0 0
    %60 = vmatprep.subr.bf16.mxu0 0
    %61 = vmatpush1.bf16.msra.mxu0 0
    %62 = vmatprep.subr.bf16.mxu0 0
    %63 = vmatpush1.bf16.msra.mxu0 0
    %64 = vmatprep.subr.bf16.mxu0 0
    %65 = vmatpush1.bf16.msra.mxu0 %v48
    %66 = vmatprep.subr.bf16.mxu0 0
    %67 = vmatpush2.bf16.msra.mxu0 0
    %68 = vmatprep.subr.bf16.mxu0 0
    %69 = vmatpush2.bf16.msra.mxu0 0
    %70 = vmatprep.subr.bf16.mxu0 0
    %71 = vmatpush2.bf16.msra.mxu0 0
    %72 = vmatprep.subr.bf16.mxu0 0
    %73 = vmatpush2.bf16.msra.mxu0 0
    %74 = vmatprep.subr.bf16.mxu0 0
    %75 = vmatpush2.bf16.msra.mxu0 0
    %76 = vmatprep.subr.bf16.mxu0 0
    %77 = vmatpush2.bf16.msra.mxu0 0
    %78 = vmatprep.subr.bf16.mxu0 0
    %79 = vmatpush2.bf16.msra.mxu0 0
    %80 = vmatprep.subr.bf16.mxu0 0
    %81 = vmatpush2.bf16.msra.mxu0 0
    %82 = vmatprep.mubr.bf16.mxu0 0
    %83 = vmatmul.mubr.bf16.gmra.mxu0 %v44
    %v84 = vpop.f32.mrf.mxu0
    %v85 = vadd.f32 %v40, %v84
    %v86 = vpop.f32.mrf.mxu0
    %v87 = vpop.f32.mrf.mxu0
    %v88 = vpop.f32.mrf.mxu0
    %89 = vdwg.mxu0
    %v90 = vtanh.pop %v85
    %v91 = vpack.c.bf16 %v90, %v90
    %v92 = vld [vmem:[#allocation2] sm:$0xf]
    %v93 = vld [vmem:[#allocation2 + $0x4] sm:$0xf]
    %v94 = vld [vmem:[#allocation2 + $0x8] sm:$0xf]
    %v95 = vld [vmem:[#allocation2 + $0xc] sm:$0xf]
    %v96 = vld [vmem:[#allocation2 + $0x10] sm:$0xf]
    %v97 = vld [vmem:[#allocation2 + $0x14] sm:$0xf]
    %v98 = vld [vmem:[#allocation2 + $0x18] sm:$0xf]
    %v99 = vld [vmem:[#allocation2 + $0x1c] sm:$0xf]
    %v100 = vld [vmem:[#allocation2 + $0x20] sm:$0xf]
    %v101 = vld [vmem:[#allocation2 + $0x24] sm:$0xf]
    %v102 = vld [vmem:[#allocation2 + $0x28] sm:$0xf]
    %v103 = vld [vmem:[#allocation2 + $0x2c] sm:$0xf]
    %v104 = vld [vmem:[#allocation2 + $0x30] sm:$0xf]
    %v105 = vld [vmem:[#allocation2 + $0x34] sm:$0xf]
    %v106 = vld [vmem:[#allocation2 + $0x38] sm:$0xf]
    %v107 = vld [vmem:[#allocation2 + $0x3c] sm:$0xf]
    %s108 = scalar_lea.vmem %s3, 1
    %v109 = vld [vmem:[%s108] sm:$0x1]
    %v111 = vlaneseq
    %v112 = vshrl.u32 %v111, 7
    %v113 = vsub.s32 0, %v112
    %v114 = vrot.slane %v109, %v113
    %v132 = vunpack.c.l.b16 %v92
    %v133 = vunpack.c.l.b16 %v93
    %v134 = vunpack.c.l.b16 %v94
    %v135 = vunpack.c.l.b16 %v95
    %v136 = vunpack.c.l.b16 %v96
    %v137 = vunpack.c.l.b16 %v97
    %v138 = vunpack.c.l.b16 %v98
    %v139 = vunpack.c.l.b16 %v99
    %v140 = vunpack.c.l.b16 %v100
    %v141 = vunpack.c.l.b16 %v101
    %v142 = vunpack.c.l.b16 %v102
    %v143 = vunpack.c.l.b16 %v103
    %v144 = vunpack.c.l.b16 %v104
    %v145 = vunpack.c.l.b16 %v105
    %v146 = vunpack.c.l.b16 %v106
    %v147 = vunpack.c.l.b16 %v107
    %v148 = vpack.c.b16 %v133, %v132
    %v149 = vpack.c.b16 %v135, %v134
    %v150 = vpack.c.b16 %v137, %v136
    %v151 = vpack.c.b16 %v139, %v138
    %v152 = vpack.c.b16 %v141, %v140
    %v153 = vpack.c.b16 %v143, %v142
    %v154 = vpack.c.b16 %v145, %v144
    %v155 = vpack.c.b16 %v147, %v146
    %164 = vmatprep.subr.bf16.mxu0 0
    %165 = vmatpush1.bf16.msra.mxu0 %v155
    %166 = vmatprep.subr.bf16.mxu0 0
    %167 = vmatpush1.bf16.msra.mxu0 %v154
    %168 = vmatprep.subr.bf16.mxu0 0
    %169 = vmatpush1.bf16.msra.mxu0 %v153
    %170 = vmatprep.subr.bf16.mxu0 0
    %171 = vmatpush1.bf16.msra.mxu0 %v152
    %172 = vmatprep.subr.bf16.mxu0 0
    %173 = vmatpush1.bf16.msra.mxu0 %v151
    %174 = vmatprep.subr.bf16.mxu0 0
    %175 = vmatpush1.bf16.msra.mxu0 %v150
    %176 = vmatprep.subr.bf16.mxu0 0
    %177 = vmatpush1.bf16.msra.mxu0 %v149
    %178 = vmatprep.subr.bf16.mxu0 0
    %179 = vmatpush1.bf16.msra.mxu0 %v148
    %180 = vmatprep.subr.bf16.mxu0 0
    %181 = vmatpush2.bf16.msra.mxu0 0
    %182 = vmatprep.subr.bf16.mxu0 0
    %183 = vmatpush2.bf16.msra.mxu0 0
    %184 = vmatprep.subr.bf16.mxu0 0
    %185 = vmatpush2.bf16.msra.mxu0 0
    %186 = vmatprep.subr.bf16.mxu0 0
    %187 = vmatpush2.bf16.msra.mxu0 0
    %188 = vmatprep.subr.bf16.mxu0 0
    %189 = vmatpush2.bf16.msra.mxu0 0
    %190 = vmatprep.subr.bf16.mxu0 0
    %191 = vmatpush2.bf16.msra.mxu0 0
    %192 = vmatprep.subr.bf16.mxu0 0
    %193 = vmatpush2.bf16.msra.mxu0 0
    %194 = vmatprep.subr.bf16.mxu0 0
    %195 = vmatpush2.bf16.msra.mxu0 0
    %196 = vmatprep.mubr.bf16.mxu0 0
    %197 = vmatmul.mubr.bf16.gmra.mxu0 %v91
    %v198 = vpop.f32.mrf.mxu0
    %v199 = vadd.f32 %v114, %v198
    %v200 = vpop.f32.mrf.mxu0
    %v201 = vpop.f32.mrf.mxu0
    %v202 = vpop.f32.mrf.mxu0
    %203 = vdwg.mxu0
    %v204 = vtanh.pop %v199
    %v205 = vpack.c.bf16 %v204, %v204
    %s206 = scalar_lea.vmem [#allocation2], 64
    %v207 = vld [vmem:[%s206] sm:$0xf]
    %v208 = vld [vmem:[%s206 + $0x4] sm:$0xf]
    %v209 = vld [vmem:[%s206 + $0x8] sm:$0xf]
    %v210 = vld [vmem:[%s206 + $0xc] sm:$0xf]
    %v211 = vld [vmem:[%s206 + $0x10] sm:$0xf]
    %v212 = vld [vmem:[%s206 + $0x14] sm:$0xf]
    %v213 = vld [vmem:[%s206 + $0x18] sm:$0xf]
    %v214 = vld [vmem:[%s206 + $0x1c] sm:$0xf]
    %v215 = vld [vmem:[%s206 + $0x20] sm:$0xf]
    %v216 = vld [vmem:[%s206 + $0x24] sm:$0xf]
    %v217 = vld [vmem:[%s206 + $0x28] sm:$0xf]
    %v218 = vld [vmem:[%s206 + $0x2c] sm:$0xf]
    %v219 = vld [vmem:[%s206 + $0x30] sm:$0xf]
    %v220 = vld [vmem:[%s206 + $0x34] sm:$0xf]
    %v221 = vld [vmem:[%s206 + $0x38] sm:$0xf]
    %v222 = vld [vmem:[%s206 + $0x3c] sm:$0xf]
    %s223 = scalar_lea.vmem %s3, 2
    %v224 = vld [vmem:[%s223] sm:$0x1]
    %v226 = vlaneseq
    %v227 = vshrl.u32 %v226, 7
    %v228 = vsub.s32 0, %v227
    %v229 = vrot.slane %v224, %v228
    %v247 = vunpack.c.l.b16 %v207
    %v248 = vunpack.c.l.b16 %v208
    %v249 = vunpack.c.l.b16 %v209
    %v250 = vunpack.c.l.b16 %v210
    %v251 = vunpack.c.l.b16 %v211
    %v252 = vunpack.c.l.b16 %v212
    %v253 = vunpack.c.l.b16 %v213
    %v254 = vunpack.c.l.b16 %v214
    %v255 = vunpack.c.l.b16 %v215
    %v256 = vunpack.c.l.b16 %v216
    %v257 = vunpack.c.l.b16 %v217
    %v258 = vunpack.c.l.b16 %v218
    %v259 = vunpack.c.l.b16 %v219
    %v260 = vunpack.c.l.b16 %v220
    %v261 = vunpack.c.l.b16 %v221
    %v262 = vunpack.c.l.b16 %v222
    %v263 = vpack.c.b16 %v248, %v247
    %v264 = vpack.c.b16 %v250, %v249
    %v265 = vpack.c.b16 %v252, %v251
    %v266 = vpack.c.b16 %v254, %v253
    %v267 = vpack.c.b16 %v256, %v255
    %v268 = vpack.c.b16 %v258, %v257
    %v269 = vpack.c.b16 %v260, %v259
    %v270 = vpack.c.b16 %v262, %v261
    %279 = vmatprep.subr.bf16.mxu0 0
    %280 = vmatpush1.bf16.msra.mxu0 %v270
    %281 = vmatprep.subr.bf16.mxu0 0
    %282 = vmatpush1.bf16.msra.mxu0 %v269
    %283 = vmatprep.subr.bf16.mxu0 0
    %284 = vmatpush1.bf16.msra.mxu0 %v268
    %285 = vmatprep.subr.bf16.mxu0 0
    %286 = vmatpush1.bf16.msra.mxu0 %v267
    %287 = vmatprep.subr.bf16.mxu0 0
    %288 = vmatpush1.bf16.msra.mxu0 %v266
    %289 = vmatprep.subr.bf16.mxu0 0
    %290 = vmatpush1.bf16.msra.mxu0 %v265
    %291 = vmatprep.subr.bf16.mxu0 0
    %292 = vmatpush1.bf16.msra.mxu0 %v264
    %293 = vmatprep.subr.bf16.mxu0 0
    %294 = vmatpush1.bf16.msra.mxu0 %v263
    %295 = vmatprep.subr.bf16.mxu0 0
    %296 = vmatpush2.bf16.msra.mxu0 0
    %297 = vmatprep.subr.bf16.mxu0 0
    %298 = vmatpush2.bf16.msra.mxu0 0
    %299 = vmatprep.subr.bf16.mxu0 0
    %300 = vmatpush2.bf16.msra.mxu0 0
    %301 = vmatprep.subr.bf16.mxu0 0
    %302 = vmatpush2.bf16.msra.mxu0 0
    %303 = vmatprep.subr.bf16.mxu0 0
    %304 = vmatpush2.bf16.msra.mxu0 0
    %305 = vmatprep.subr.bf16.mxu0 0
    %306 = vmatpush2.bf16.msra.mxu0 0
    %307 = vmatprep.subr.bf16.mxu0 0
    %308 = vmatpush2.bf16.msra.mxu0 0
    %309 = vmatprep.subr.bf16.mxu0 0
    %310 = vmatpush2.bf16.msra.mxu0 0
    %311 = vmatprep.mubr.bf16.mxu0 0
    %312 = vmatmul.mubr.bf16.gmra.mxu0 %v205
    %v313 = vpop.f32.mrf.mxu0
    %v314 = vadd.f32 %v229, %v313
    %v315 = vpop.f32.mrf.mxu0
    %v316 = vpop.f32.mrf.mxu0
    %v317 = vpop.f32.mrf.mxu0
    %318 = vdwg.mxu0
    %v319 = vtanh.pop %v314
    %v320 = vpack.c.bf16 %v319, %v319
    %s321 = scalar_lea.vmem [#allocation2], 128
    %v322 = vld [vmem:[%s321] sm:$0xf]
    %v323 = vld [vmem:[%s321 + $0x4] sm:$0xf]
    %v324 = vld [vmem:[%s321 + $0x8] sm:$0xf]
    %v325 = vld [vmem:[%s321 + $0xc] sm:$0xf]
    %v326 = vld [vmem:[%s321 + $0x10] sm:$0xf]
    %v327 = vld [vmem:[%s321 + $0x14] sm:$0xf]
    %v328 = vld [vmem:[%s321 + $0x18] sm:$0xf]
    %v329 = vld [vmem:[%s321 + $0x1c] sm:$0xf]
    %v330 = vld [vmem:[%s321 + $0x20] sm:$0xf]
    %v331 = vld [vmem:[%s321 + $0x24] sm:$0xf]
    %v332 = vld [vmem:[%s321 + $0x28] sm:$0xf]
    %v333 = vld [vmem:[%s321 + $0x2c] sm:$0xf]
    %v334 = vld [vmem:[%s321 + $0x30] sm:$0xf]
    %v335 = vld [vmem:[%s321 + $0x34] sm:$0xf]
    %v336 = vld [vmem:[%s321 + $0x38] sm:$0xf]
    %v337 = vld [vmem:[%s321 + $0x3c] sm:$0xf]
    %s338 = scalar_lea.vmem %s3, 3
    %v339 = vld [vmem:[%s338] sm:$0x1]
    %v341 = vlaneseq
    %v342 = vshrl.u32 %v341, 7
    %v343 = vsub.s32 0, %v342
    %v344 = vrot.slane %v339, %v343
    %v362 = vunpack.c.l.b16 %v322
    %v363 = vunpack.c.l.b16 %v323
    %v364 = vunpack.c.l.b16 %v324
    %v365 = vunpack.c.l.b16 %v325
    %v366 = vunpack.c.l.b16 %v326
    %v367 = vunpack.c.l.b16 %v327
    %v368 = vunpack.c.l.b16 %v328
    %v369 = vunpack.c.l.b16 %v329
    %v370 = vunpack.c.l.b16 %v330
    %v371 = vunpack.c.l.b16 %v331
    %v372 = vunpack.c.l.b16 %v332
    %v373 = vunpack.c.l.b16 %v333
    %v374 = vunpack.c.l.b16 %v334
    %v375 = vunpack.c.l.b16 %v335
    %v376 = vunpack.c.l.b16 %v336
    %v377 = vunpack.c.l.b16 %v337
    %v378 = vpack.c.b16 %v363, %v362
    %v379 = vpack.c.b16 %v365, %v364
    %v380 = vpack.c.b16 %v367, %v366
    %v381 = vpack.c.b16 %v369, %v368
    %v382 = vpack.c.b16 %v371, %v370
    %v383 = vpack.c.b16 %v373, %v372
    %v384 = vpack.c.b16 %v375, %v374
    %v385 = vpack.c.b16 %v377, %v376
    %394 = vmatprep.subr.bf16.mxu0 0
    %395 = vmatpush1.bf16.msra.mxu0 %v385
    %396 = vmatprep.subr.bf16.mxu0 0
    %397 = vmatpush1.bf16.msra.mxu0 %v384
    %398 = vmatprep.subr.bf16.mxu0 0
    %399 = vmatpush1.bf16.msra.mxu0 %v383
    %400 = vmatprep.subr.bf16.mxu0 0
    %401 = vmatpush1.bf16.msra.mxu0 %v382
    %402 = vmatprep.subr.bf16.mxu0 0
    %403 = vmatpush1.bf16.msra.mxu0 %v381
    %404 = vmatprep.subr.bf16.mxu0 0
    %405 = vmatpush1.bf16.msra.mxu0 %v380
    %406 = vmatprep.subr.bf16.mxu0 0
    %407 = vmatpush1.bf16.msra.mxu0 %v379
    %408 = vmatprep.subr.bf16.mxu0 0
    %409 = vmatpush1.bf16.msra.mxu0 %v378
    %410 = vmatprep.subr.bf16.mxu0 0
    %411 = vmatpush2.bf16.msra.mxu0 0
    %412 = vmatprep.subr.bf16.mxu0 0
    %413 = vmatpush2.bf16.msra.mxu0 0
    %414 = vmatprep.subr.bf16.mxu0 0
    %415 = vmatpush2.bf16.msra.mxu0 0
    %416 = vmatprep.subr.bf16.mxu0 0
    %417 = vmatpush2.bf16.msra.mxu0 0
    %418 = vmatprep.subr.bf16.mxu0 0
    %419 = vmatpush2.bf16.msra.mxu0 0
    %420 = vmatprep.subr.bf16.mxu0 0
    %421 = vmatpush2.bf16.msra.mxu0 0
    %422 = vmatprep.subr.bf16.mxu0 0
    %423 = vmatpush2.bf16.msra.mxu0 0
    %424 = vmatprep.subr.bf16.mxu0 0
    %425 = vmatpush2.bf16.msra.mxu0 0
    %426 = vmatprep.mubr.bf16.mxu0 0
    %427 = vmatmul.mubr.bf16.gmra.mxu0 %v320
    %v428 = vpop.f32.mrf.mxu0
    %v429 = vadd.f32 %v344, %v428
    %v430 = vpop.f32.mrf.mxu0
    %v431 = vpop.f32.mrf.mxu0
    %v432 = vpop.f32.mrf.mxu0
    %433 = vdwg.mxu0
    %434 = vst [vmem:[%s4] sm:$0xff] %v429
    // Predicated region
    $region22: #{dnn2_forward.1} parent=1 // pred_check
      _
    $region23: #{dnn2_forward.1} parent=1 // pred_check_branch
      %436 = sbr.rel (0) target = $region25
    $region24: #{dnn2_forward.1} parent=1 // pred_region
      _
    $region25: #{dnn2_forward.1} parent=1 // pred_fallthru
      _
    // Predicated region
    $region26: #{dnn2_forward.1} parent=1 // pred_check
      _
    $region27: #{dnn2_forward.1} parent=1 // pred_check_branch
      %438 = sbr.rel (0) target = $region29
    $region28: #{dnn2_forward.1} parent=1 // pred_region
      _
    $region29: #{dnn2_forward.1} parent=1 // pred_fallthru
      _
    %439 = vsyncpa [#allocation3], 1

</llo_original>
